<compile_context>
chip_gen: v7x
topology: tpu7x:2x2x1
jax: 0.10.0
libtpu: 0.0.40
codegen_flags: <defaults>
</compile_context>

<pallas_src>
import jax
import jax.numpy as jnp
from jax import lax
from jax.experimental import pallas as pl
from jax.experimental.pallas import tpu as pltpu

_MIB = 1024 * 1024
_ROW_ALIGN = 16  # bf16 packs 2 rows per sublane; also valid for f32.


def _round_up(x, m):
    return ((x + m - 1) // m) * m


def _vmem_capacity_bytes():
    """Per-core VMEM capacity (128 MiB on v5e/v6e, 64 MiB on v7x)."""
    try:
        info = pltpu.get_tpu_info()
        cap = int(getattr(info, "vmem_capacity_bytes", 0) or 0)
        if cap > 0:
            return cap
    except Exception:
        pass
    return 128 * _MIB


def _ce_kernel(n_ref, logits_ref, tgt_ref, out_ref):
    """Partial cross-entropy sum for one row tile.

    n_ref:      SMEM (1,) int32  -- true row count (scalar prefetch).
    logits_ref: VMEM (TR, V)     -- logits in native dtype (f32 / bf16).
    tgt_ref:    VMEM (TR, 1)     -- int32 target indices.
    out_ref:    VMEM (1, 1, 1)   -- f32 partial sum for this tile.
    """
    i = pl.program_id(0)
    n_valid = n_ref[0]

    x = logits_ref[...]                                  # (TR, V) native dtype
    tgt = tgt_ref[...]                                   # (TR, 1) int32
    tr = x.shape[0]

    # Pass 1: row max on the native dtype (max is exact in bf16); widen only
    # the (TR, 1) result.
    m = jnp.max(x, axis=-1, keepdims=True).astype(jnp.float32)       # (TR, 1)

    # Pass 2: target-logit gather via one-hot select, also in the native
    # dtype (exactly one element per row survives -> lossless f32 cast of
    # the (TR, 1) result). compare+select+sum fuse; no extra f32 tile.
    col = lax.broadcasted_iota(jnp.int32, x.shape, 1)                 # (TR, V)
    tgt_logit = jnp.sum(
        jnp.where(col == tgt, x, jnp.zeros((), x.dtype)),
        axis=-1, keepdims=True,
    ).astype(jnp.float32)                                             # (TR, 1)

    # Pass 3: the only full-tile f32 work -- shifted exp-sum for logsumexp.
    sumexp = jnp.sum(jnp.exp(x.astype(jnp.float32) - m),
                     axis=-1, keepdims=True)                          # (TR, 1)
    lse = m + jnp.log(sumexp)                                         # (TR, 1)

    # Mask rows beyond the true N (Pallas-padded partial tiles hold garbage);
    # select (not multiply) so Inf/NaN in dead rows cannot poison the sum.
    row = lax.broadcasted_iota(jnp.int32, (tr, 1), 0)
    valid = (i * tr + row) < n_valid
    per_row = jnp.where(valid, lse - tgt_logit, 0.0)                  # (TR, 1)

    out_ref[...] = jnp.zeros_like(out_ref) + jnp.sum(per_row)


def cross_entropy_loss(outputs, targets, *, tile_rows=None):
    """Mean cross-entropy of `outputs` (..., V) vs integer `targets` (...)."""
    V = outputs.shape[-1]
    logits = outputs.reshape(-1, V)                  # streamed in native dtype
    tgt = targets.reshape(-1, 1).astype(jnp.int32)   # (N, 1)
    N = logits.shape[0]

    itemsize = jnp.dtype(logits.dtype).itemsize
    vmem_cap = _vmem_capacity_bytes()
    small_vmem = vmem_cap <= 80 * _MIB               # v7x: 64 MiB per TC

    # ---- generation-aware tile sizing -------------------------------------
    # Per-row working set: double-buffered native logits stream + ~2 live
    # f32-sized full-tile temporaries inside the kernel.
    per_row_bytes = 2 * V * itemsize + 2 * V * 4
    budget = (36 if small_vmem else 80) * _MIB
    if tile_rows is None:
        tile_rows = budget // max(per_row_bytes, 1)
        tile_rows = max(_ROW_ALIGN, (tile_rows // _ROW_ALIGN) * _ROW_ALIGN)
        tile_rows = min(tile_rows, 2048)
        if small_vmem:
            # Keep >= ~8 tiles so the "parallel" axis can feed both v7x cores.
            tile_rows = min(
                tile_rows,
                max(_ROW_ALIGN, _round_up(pl.cdiv(N, 8), _ROW_ALIGN)))
    else:
        tile_rows = max(_ROW_ALIGN, _round_up(int(tile_rows), _ROW_ALIGN))
    tile_rows = min(tile_rows, _round_up(N, _ROW_ALIGN))
    num_tiles = pl.cdiv(N, tile_rows)

    # Deeper buffering of the logits stream only when the vocab is so large
    # that tiles are tiny, and only on 128-MiB-VMEM parts.
    block_bytes = tile_rows * V * itemsize
    n_buf = 3 if (not small_vmem and tile_rows <= 32 and num_tiles > 3) else 2

    footprint = (n_buf * block_bytes                 # logits pipeline buffers
                 + 2 * tile_rows * V * 4             # in-kernel f32 working set
                 + 2 * _MIB)                         # targets / partials / slack
    cap_limit = (48 if small_vmem else 100) * _MIB
    vmem_limit = int(min(cap_limit, max(32 * _MIB, footprint + 8 * _MIB)))

    logits_spec_kwargs = {}
    if n_buf != 2:
        logits_spec_kwargs["pipeline_mode"] = pl.Buffered(n_buf)

    cost = pl.CostEstimate(
        flops=int(5 * N * V),
        transcendentals=int(N * V),
        bytes_accessed=int(N * V * itemsize + N * 4 + num_tiles * 4),
    )

    partials = pl.pallas_call(
        _ce_kernel,
        out_shape=jax.ShapeDtypeStruct((num_tiles, 1, 1), jnp.float32),
        grid_spec=pltpu.PrefetchScalarGridSpec(
            num_scalar_prefetch=1,                   # N -> SMEM (no recompile bake-in)
            grid=(num_tiles,),
            in_specs=[
                pl.BlockSpec((tile_rows, V), lambda i, n: (i, 0),
                             **logits_spec_kwargs),
                pl.BlockSpec((tile_rows, 1), lambda i, n: (i, 0)),
            ],
            out_specs=pl.BlockSpec((1, 1, 1), lambda i, n: (i, 0, 0)),
        ),
        compiler_params=pltpu.CompilerParams(
            dimension_semantics=("parallel",),
            vmem_limit_bytes=vmem_limit,
        ),
        cost_estimate=cost,
    )(jnp.array([N], dtype=jnp.int32), logits, tgt)

    # Finish the mean in JAX (pairwise f32 reduce over the few partials).
    return jnp.sum(partials) / jnp.float32(N)


def _reference(outputs, targets):
    V = outputs.shape[-1]
    logits = outputs.reshape(-1, V).astype(jnp.float32)
    tgt = targets.reshape(-1)
    logp = jax.nn.log_softmax(logits, axis=-1)
    nll = -jnp.take_along_axis(logp, tgt[:, None], axis=-1)[:, 0]
    return jnp.mean(nll)


if __name__ == "__main__":
    key = jax.random.PRNGKey(0)
    k1, k2, k3, k4 = jax.random.split(key, 4)

    # Case 1: module-shaped small input (batch=2, seq=8, vocab=128), f32,
    # single tile -- matches the PyTorch forward semantics.
    batch, seq, vocab = 2, 8, 128
    outputs = jax.random.normal(k1, (batch, seq, vocab), dtype=jnp.float32)
    targets = jax.random.randint(k2, (batch, seq), 0, vocab, dtype=jnp.int32)
    loss = cross_entropy_loss(outputs, targets)
    jax.block_until_ready(loss)
    ref = _reference(outputs, targets)
    assert jnp.allclose(loss, ref, atol=1e-4, rtol=1e-4), (loss, ref)

    # Case 2: bf16 logits, N (=21) not a multiple of tile_rows (=16):
    # exercises the multi-tile reduction and the masked partial-tile path.
    batch2, seq2, vocab2 = 3, 7, 160
    out_bf = jax.random.normal(k3, (batch2, seq2, vocab2),
                               dtype=jnp.float32).astype(jnp.bfloat16)
    tgt2 = jax.random.randint(k4, (batch2, seq2), 0, vocab2, dtype=jnp.int32)
    loss2 = cross_entropy_loss(out_bf, tgt2, tile_rows=16)
    jax.block_until_ready(loss2)
    ref2 = _reference(out_bf, tgt2)
    assert jnp.allclose(loss2, ref2, atol=2e-3, rtol=2e-3), (loss2, ref2)

    print("KERNEL_OK")
</pallas_src>

<mosaic_0001>
module attributes {stable_mosaic.version = 11 : i64} {
  func.func @_ce_kernel(%arg0: i32, %arg1: memref<1xi32, #tpu.memory_space<smem>>, %arg2: memref<16x128xf32, #tpu.memory_space<vmem>>, %arg3: memref<16x1xi32, #tpu.memory_space<vmem>>, %arg4: memref<1x1x1xf32, #tpu.memory_space<vmem>>) attributes {dimension_semantics = [#tpu.dimension_semantics<parallel>], iteration_bounds = array<i64: 1>, scalar_prefetch = 1 : i64, scratch_operands = 0 : i64, tpu.core_type = #tpu.core_type<tc>, window_params = [{transform_indices = @transform_0, window_bounds = array<i64: 16, 128>}, {transform_indices = @transform_1, window_bounds = array<i64: 16, 1>}, {transform_indices = @transform_2, window_bounds = array<i64: 1, 1, 1>}]} {
    %c0 = arith.constant 0 : index
    %0 = memref.load %arg1[%c0] : memref<1xi32, #tpu.memory_space<smem>>
    %c0_0 = arith.constant 0 : index
    %c0_1 = arith.constant 0 : index
    %1 = vector.load %arg2[%c0_0, %c0_1] : memref<16x128xf32, #tpu.memory_space<vmem>>, vector<16x128xf32>
    %c0_2 = arith.constant 0 : index
    %c0_3 = arith.constant 0 : index
    %2 = vector.load %arg3[%c0_2, %c0_3] : memref<16x1xi32, #tpu.memory_space<vmem>>, vector<16x1xi32>
    %cst = arith.constant dense<0xFF800000> : vector<16xf32>
    %3 = vector.multi_reduction <maximumf>, %1, %cst [1] : vector<16x128xf32> to vector<16xf32>
    %4 = vector.shape_cast %3 : vector<16xf32> to vector<16x1xf32>
    %5 = tpu.iota {dimensions = array<i32: 1>} : vector<16x128xi32>
    %6 = vector.broadcast %2 : vector<16x1xi32> to vector<16x128xi32>
    %7 = arith.cmpi eq, %5, %6 : vector<16x128xi32>
    %cst_4 = arith.constant 0.000000e+00 : f32
    %8 = vector.broadcast %cst_4 : f32 to vector<16x128xf32>
    %9 = arith.select %7, %1, %8 : vector<16x128xi1>, vector<16x128xf32>
    %cst_5 = arith.constant dense<0.000000e+00> : vector<16xf32>
    %10 = vector.multi_reduction <add>, %9, %cst_5 [1] : vector<16x128xf32> to vector<16xf32>
    %11 = vector.shape_cast %10 : vector<16xf32> to vector<16x1xf32>
    %12 = vector.broadcast %4 : vector<16x1xf32> to vector<16x128xf32>
    %13 = arith.subf %1, %12 : vector<16x128xf32>
    %14 = math.exp %13 : vector<16x128xf32>
    %cst_6 = arith.constant dense<0.000000e+00> : vector<16xf32>
    %15 = vector.multi_reduction <add>, %14, %cst_6 [1] : vector<16x128xf32> to vector<16xf32>
    %16 = vector.shape_cast %15 : vector<16xf32> to vector<16x1xf32>
    %17 = math.log %16 : vector<16x1xf32>
    %18 = arith.addf %4, %17 : vector<16x1xf32>
    %19 = tpu.iota {dimensions = array<i32: 0>} : vector<16x1xi32>
    %c16_i32 = arith.constant 16 : i32
    %20 = arith.muli %arg0, %c16_i32 : i32
    %21 = vector.broadcast %20 : i32 to vector<16x1xi32>
    %22 = arith.addi %21, %19 : vector<16x1xi32>
    %23 = vector.broadcast %0 : i32 to vector<16x1xi32>
    %24 = arith.cmpi slt, %22, %23 : vector<16x1xi32>
    %25 = arith.subf %18, %11 : vector<16x1xf32>
    %cst_7 = arith.constant 0.000000e+00 : f32
    %26 = vector.broadcast %cst_7 : f32 to vector<16x1xf32>
    %27 = arith.select %24, %25, %26 : vector<16x1xi1>, vector<16x1xf32>
    %cst_8 = arith.constant 0.000000e+00 : f32
    %28 = vector.broadcast %cst_8 : f32 to vector<1x1x1xf32>
    %29 = vector.shape_cast %27 : vector<16x1xf32> to vector<1x16x1xf32>
    %cst_9 = arith.constant dense<0.000000e+00> : vector<1xf32>
    %30 = vector.multi_reduction <add>, %29, %cst_9 [1, 2] : vector<1x16x1xf32> to vector<1xf32>
    %31 = vector.shape_cast %30 : vector<1xf32> to vector<1x1x1xf32>
    %32 = vector.extract %31[0, 0, 0] : f32 from vector<1x1x1xf32>
    %33 = vector.broadcast %32 : f32 to vector<1x1x1xf32>
    %34 = arith.addf %28, %33 : vector<1x1x1xf32>
    %c0_10 = arith.constant 0 : index
    %c0_11 = arith.constant 0 : index
    %c0_12 = arith.constant 0 : index
    %35 = vector.load %arg4[%c0_10, %c0_11, %c0_12] : memref<1x1x1xf32, #tpu.memory_space<vmem>>, vector<1x1x1xf32>
    tpu.vector_store %arg4[%c0_10, %c0_11, %c0_12], %34 {strides = array<i32>} : memref<1x1x1xf32, #tpu.memory_space<vmem>>, vector<1x1x1xf32>,
    return
  }
  func.func @transform_0(%arg0: i32, %arg1: memref<1xi32, #tpu.memory_space<smem>>) -> (i32, i32) {
    %c0_i32 = arith.constant 0 : i32
    %c0_i32_0 = arith.constant 0 : i32
    return %arg0, %c0_i32 : i32, i32
  }
  func.func @transform_1(%arg0: i32, %arg1: memref<1xi32, #tpu.memory_space<smem>>) -> (i32, i32) {
    %c0_i32 = arith.constant 0 : i32
    %c0_i32_0 = arith.constant 0 : i32
    return %arg0, %c0_i32 : i32, i32
  }
  func.func @transform_2(%arg0: i32, %arg1: memref<1xi32, #tpu.memory_space<smem>>) -> (i32, i32, i32) {
    %c0_i32 = arith.constant 0 : i32
    %c0_i32_0 = arith.constant 0 : i32
    %c0_i32_1 = arith.constant 0 : i32
    return %arg0, %c0_i32, %c0_i32_0 : i32, i32, i32
  }
}

</mosaic_0001>

<llo_original>
// kernel: tpu_custom_call.1
$region0: #{tpu_custom_call.1}
  #allocation0 [shape = 'u32[]', space=smem, size = 0x4, offset = 0x4, fixed_abs, tag = 'smem constant byte address 0x4 - core index']
  #allocation1 [shape = 'u32[144,128]{1,0:T(1,128)}', space=vmem, size = 0x12000, scoped, tag = 'internal scratch']
  #allocation2 [shape = 's32[1]{0}', space=sflag, size = 0x4, scoped, tag = 'scoped memory for tpu_custom_call.1']
  #allocation3 [shape = 's32[1]{0:T(128)S(6)}', space=smem, size = 0x200, scoped, tag = 'prefetched SMEM operand 0']
  %s0 = inlined_call_operand.<no memory space> [shape: s32[1], index: 0, kind: input, shape index: {}]
  %s1 = inlined_call_operand.vmem [shape: f32[16,128], index: 1, kind: input, shape index: {}]
  %s2 = inlined_call_operand.vmem [shape: s32[16,1], index: 2, kind: input, shape index: {}]
  %s3 = inlined_call_operand.hbm [shape: f32[1,1,1], index: 3, kind: output, shape index: {}]
  %s4 = sld [smem:[#allocation0]]
  $region18: #{tpu_custom_call.1} parent=0
    _
  %s6 = ssub.s32 1, %s4
  %s7 = scalar_select 0, %s6, %s4
  %8 = sst [smem:[#allocation3]] %s0
  $region1: #{tpu_custom_call.1} parent=0
    #allocation4 [shape = 'u8[512]{0}', space=vmem, size = 0x400, scoped, tag = 'output window, operand 0, single buffered']
    #allocation5 [shape = 's32[1]{0}', space=sflag, size = 0x4, scoped, tag = 'scoped memory for tpu_custom_call.1']
    %9 = vsyncpa [#allocation5], 0
    // Predicated region
    $region2: #{tpu_custom_call.1} parent=1 // pred_check
      _
    $region3: #{tpu_custom_call.1} parent=1 // pred_check_branch
      %11 = sbr.rel (0) target = $region5
    $region4: #{tpu_custom_call.1} parent=1 // pred_region
      _
    $region5: #{tpu_custom_call.1} parent=1 // pred_fallthru
      _
    // Predicated region
    $region6: #{tpu_custom_call.1} parent=1 // pred_check
      _
    $region7: #{tpu_custom_call.1} parent=1 // pred_check_branch
      %13 = sbr.rel (0) target = $region9
    $region8: #{tpu_custom_call.1} parent=1 // pred_region
      _
    $region9: #{tpu_custom_call.1} parent=1 // pred_fallthru
      _
    %s14 = sld [smem:[#allocation3]]
    %v15 = vld [vmem:[%s1] sm:$0xff]
    %v16 = vld [vmem:[%s1 + $0x8] sm:$0xff]
    %v17 = vld [vmem:[%s2] sm:$0xff]
    %v18 = vld [vmem:[%s2 + $0x8] sm:$0xff]
    %19 = vmax.xlane.f32.xlu0 %v15
    %v20 = vpop.xlane.xlu0 %19
    %21 = vmax.xlane.f32.xlu0 %v16
    %v22 = vpop.xlane.xlu0 %21
    %v23 = vlaneseq
    %v24 = vand.u32 %v23, 127
    %25 = vset.pattern.permute.xlu0 0
    %26 = vperm.xlu0 %25, %v17
    %v27 = vpop.permute.xlu0 %26
    %28 = vset.pattern.permute.xlu0 0
    %29 = vperm.xlu0 %28, %v18
    %v30 = vpop.permute.xlu0 %29
    %vm31 = vcmp.eq.s32.totalorder %v24, %v27
    %vm32 = vcmp.eq.s32.totalorder %v24, %v30
    %v33 = vsel %vm31, %v15, 0.0
    %v34 = vsel %vm32, %v16, 0.0
    %35 = vadd.xlane.f32.xlu0 %v33
    %v36 = vpop.xlane.xlu0 %35
    %37 = vadd.xlane.f32.xlu0 %v34
    %v38 = vpop.xlane.xlu0 %37
    %v39 = vsub.f32 %v15, %v20
    %v40 = vsub.f32 %v16, %v22
    %v41 = vmul.f32 %v39, 1.442695
    %v42 = vpow.pop %v41
    %v43 = vmul.f32 %v40, 1.442695
    %v44 = vpow.pop %v43
    %45 = vadd.xlane.f32.xlu0 %v42
    %v46 = vpop.xlane.xlu0 %45
    %47 = vadd.xlane.f32.xlu0 %v44
    %v48 = vpop.xlane.xlu0 %47
    %v49 = vlog2.pop %v46
    %v50 = vmul.f32 %v49, 0.6931472
    %v51 = vlog2.pop %v48
    %v52 = vmul.f32 %v51, 0.6931472
    %v53 = vadd.f32 %v20, %v50
    %v54 = vadd.f32 %v22, %v52
    %v55 = vlaneseq
    %v56 = vshrl.u32 %v55, 7
    %v57 = vadd.s32 %v56, 8
    %s58 = smul.u32 0, 16
    %v59 = vstv %s58
    %v60 = vadd.s32 %v59, %v56
    %v61 = vadd.s32 %v59, %v57
    %v62 = vstv %s14
    %vm63 = vcmp.lt.s32.totalorder %v60, %v62
    %vm64 = vcmp.lt.s32.totalorder %v61, %v62
    %v65 = vsub.f32 %v53, %v36
    %v66 = vsub.f32 %v54, %v38
    %v67 = vsel %vm63, %v65, 0.0
    %v68 = vsel %vm64, %v66, 0.0
    %vm69 = vcmask 7168
    %v70 = vsel %vm69, %v67, 0.0
    %v71 = vsel %vm69, %v68, 0.0
    %v72 = vadd.f32 %v70, %v71
    %73 = vadd.xlane.f32.xlu0 %v72
    %v74 = vpop.xlane.xlu0 %73
    %v75 = vrot.slane %v74, 4
    %v76 = vadd.f32 %v74, %v75
    %v77 = vrot.slane %v76, 2
    %v78 = vadd.f32 %v76, %v77
    %v79 = vrot.slane %v78, 1
    %v80 = vadd.f32 %v78, %v79
    %s81 = vtos %v80
    %v82 = vstv %s81
    %v83 = vadd.f32 %v82, 0.0
    %vm84 = vcmask 0
    %85 = vst.msk [vmem:[#allocation4] sm:$0x1] %vm84, %v83
    // Predicated region
    $region10: #{tpu_custom_call.1} parent=1 // pred_check
      _
    $region11: #{tpu_custom_call.1} parent=1 // pred_check_branch
      %87 = sbr.rel (0) target = $region13
    $region12: #{tpu_custom_call.1} parent=1 // pred_region
      %s89 = ssub.s32 16, 16
      %90 = vsyncadd [#allocation5], %s89
      %s92 = sshll.u32 [#allocation4], 4
      %s93 = int_to_ptr.vmem [resolvable:$true] %s92
      %95 = dma.vmem_to_hbm [thread:$0]  %s93, 16, %s3, [#allocation5]
    $region13: #{tpu_custom_call.1} parent=1 // pred_fallthru
      _
    // Predicated region
    $region14: #{tpu_custom_call.1} parent=1 // pred_check
      _
    $region15: #{tpu_custom_call.1} parent=1 // pred_check_branch
      %97 = sbr.rel (0) target = $region17
    $region16: #{tpu_custom_call.1} parent=1 // pred_region
      %98 = dma.done [#allocation5], 16
    $region17: #{tpu_custom_call.1} parent=1 // pred_fallthru
      _
    %99 = vsyncpa [#allocation5], 1

</llo_original>
